<compile_context>
chip_gen: v5e
topology: v5e:2x2
jax: 0.10.0
libtpu: 0.0.40
codegen_flags: <defaults>
</compile_context>

<pallas_src>
from functools import partial
from random import random

import jax
import jax.numpy as jnp
from jax import lax
from jax.experimental import pallas as pl
from jax.experimental.pallas import tpu as pltpu


# ----------------------------------------------------------------------------
# Pallas kernel: reverse every aligned `group`-sized window along the lane axis
# ----------------------------------------------------------------------------
def _hflip_lanes_kernel(x_ref, o_ref, *, group):
    """out[r, g*group + w] = x[r, g*group + (group-1-w)]

    Butterfly reversal: stage k computes y[j] = x[j XOR k] using two static
    lane shifts (jnp.roll -> slice + concatenate) and a select on the lane
    index.  Composing k = 1, 2, ..., group/2 maps j -> j XOR (group-1), i.e.
    reversal inside each aligned group.  Values that wrap around the array
    edge are never selected (the (lane & k) predicate masks them), so this is
    exact.  No MXU, no gather, no permutation-matrix constant.
    """
    x = x_ref[...]
    lane = lax.broadcasted_iota(jnp.int32, x.shape, dimension=x.ndim - 1)
    k = 1
    while k < group:
        shifted_down = jnp.roll(x, k, axis=-1)   # [j] = x[j - k]
        shifted_up = jnp.roll(x, -k, axis=-1)    # [j] = x[j + k]
        x = jnp.where((lane & k) != 0, shifted_down, shifted_up)
        k *= 2
    o_ref[...] = x


def pallas_hflip(images):
    """torch.flip(images, dims=(3,)) for NCHW images, as one Pallas kernel."""
    N, C, H, W = images.shape
    if W <= 0 or (W & (W - 1)) != 0:
        # TODO(synk): non-power-of-two widths need a different lane
        # permutation (e.g. concat of W column slices); GAN image sizes are
        # powers of two, so only that path is implemented.
        raise NotImplementedError("pallas_hflip requires power-of-two W")

    rows, lanes = N * C, H * W
    x2 = images.reshape(rows, lanes)          # lane-dense view, free reshape

    # Row tile: a multiple of 8 that divides `rows`, bounded so that
    # (in + out) x double-buffer stays well under v7x's 32 MiB scoped VMEM.
    # TODO(synk): for very large H*W the lane axis should also be tiled (in
    # multiples of lcm(W, 128)); not needed at these augmentation-sized shapes.
    bytes_per_row = lanes * images.dtype.itemsize
    max_rows = max(8, (8 * 1024 * 1024) // (4 * bytes_per_row))
    tile_rows = rows
    for cand in (512, 256, 128, 64, 32, 16, 8):
        if cand <= max_rows and rows % cand == 0:
            tile_rows = cand
            break

    out = pl.pallas_call(
        partial(_hflip_lanes_kernel, group=W),
        out_shape=jax.ShapeDtypeStruct((rows, lanes), images.dtype),
        grid=(rows // tile_rows,),
        in_specs=[pl.BlockSpec((tile_rows, lanes), lambda i: (i, 0))],
        out_specs=pl.BlockSpec((tile_rows, lanes), lambda i: (i, 0)),
        compiler_params=pltpu.CompilerParams(
            dimension_semantics=("parallel",)),
        cost_estimate=pl.CostEstimate(
            flops=4 * images.size,
            transcendentals=0,
            bytes_accessed=2 * images.size * images.dtype.itemsize),
    )(x2)
    return out.reshape(N, C, H, W)


# ----------------------------------------------------------------------------
# RandomApply: exact port of the nn.Module's forward semantics
# ----------------------------------------------------------------------------
class RandomApply:
    """With probability `prob` return fn(x), else fn_else(x).

    The coin flip is Python-level (`random.random()`), evaluated on every
    call exactly like the nn.Module's forward.  Keep this wrapper OUTSIDE
    jax.jit: jitting it would bake one sampled branch into the compiled
    graph instead of re-sampling per step.  (The wrapped fns themselves may
    be jitted / contain pallas_calls.)
    """

    def __init__(self, prob, fn, fn_else=lambda x: x):
        self.prob = prob
        self.fn = fn
        self.fn_else = fn_else

    def __call__(self, x):
        fn = self.fn if random() < self.prob else self.fn_else
        return fn(x)


# ----------------------------------------------------------------------------
# Demo / self-check
# ----------------------------------------------------------------------------
if __name__ == "__main__":
    key = jax.random.PRNGKey(0)
    images = jax.random.normal(key, (2, 4, 16, 16), jnp.float32)   # NCHW

    hflip = jax.jit(pallas_hflip)

    # Deterministic endpoints of the Bernoulli branch:
    #   prob=1.0 -> random() < 1.0 always True  -> fn applied every call
    #   prob=0.0 -> random() < 0.0 always False -> fn_else (identity)
    always_aug = RandomApply(1.0, hflip)
    never_aug = RandomApply(0.0, hflip)

    flipped = jax.block_until_ready(always_aug(images))
    untouched = jax.block_until_ready(never_aug(images))

    assert flipped.shape == images.shape
    # Pure permutation -> bit-exact against the XLA reference.
    assert jnp.array_equal(flipped, jnp.flip(images, axis=3))
    assert jnp.array_equal(untouched, images)

    # Stochastic histoGAN-style usage: result must be one of the two branches.
    maybe = jax.block_until_ready(RandomApply(0.5, hflip)(images))
    assert bool(jnp.array_equal(maybe, images)) or bool(
        jnp.array_equal(maybe, flipped))

    print("KERNEL_OK")
</pallas_src>

<mosaic_0001>
module attributes {stable_mosaic.version = 11 : i64} {
  func.func @_hflip_lanes_kernel(%arg0: i32, %arg1: memref<8x256xf32, #tpu.memory_space<vmem>>, %arg2: memref<8x256xf32, #tpu.memory_space<vmem>>) attributes {dimension_semantics = [#tpu.dimension_semantics<parallel>], iteration_bounds = array<i64: 1>, scalar_prefetch = 0 : i64, scratch_operands = 0 : i64, tpu.core_type = #tpu.core_type<tc>, window_params = [{transform_indices = @transform_0, window_bounds = array<i64: 8, 256>}, {transform_indices = @transform_1, window_bounds = array<i64: 8, 256>}]} {
    %c0 = arith.constant 0 : index
    %c0_0 = arith.constant 0 : index
    %0 = vector.load %arg1[%c0, %c0_0] : memref<8x256xf32, #tpu.memory_space<vmem>>, vector<8x256xf32>
    %1 = tpu.iota {dimensions = array<i32: 1>} : vector<8x256xi32>
    %2 = vector.extract_strided_slice %0 {offsets = [0, 255], sizes = [8, 1], strides = [1, 1]} : vector<8x256xf32> to vector<8x1xf32>
    %3 = vector.extract_strided_slice %0 {offsets = [0, 0], sizes = [8, 255], strides = [1, 1]} : vector<8x256xf32> to vector<8x255xf32>
    %4 = tpu.concatenate %2, %3 in 1 : vector<8x1xf32>, vector<8x255xf32> -> vector<8x256xf32>
    %5 = vector.extract_strided_slice %0 {offsets = [0, 1], sizes = [8, 255], strides = [1, 1]} : vector<8x256xf32> to vector<8x255xf32>
    %6 = vector.extract_strided_slice %0 {offsets = [0, 0], sizes = [8, 1], strides = [1, 1]} : vector<8x256xf32> to vector<8x1xf32>
    %7 = tpu.concatenate %5, %6 in 1 : vector<8x255xf32>, vector<8x1xf32> -> vector<8x256xf32>
    %c1_i32 = arith.constant 1 : i32
    %8 = vector.broadcast %c1_i32 : i32 to vector<8x256xi32>
    %9 = arith.andi %1, %8 : vector<8x256xi32>
    %c0_i32 = arith.constant 0 : i32
    %10 = vector.broadcast %c0_i32 : i32 to vector<8x256xi32>
    %11 = arith.cmpi ne, %9, %10 : vector<8x256xi32>
    %12 = arith.select %11, %4, %7 : vector<8x256xi1>, vector<8x256xf32>
    %13 = vector.extract_strided_slice %12 {offsets = [0, 254], sizes = [8, 2], strides = [1, 1]} : vector<8x256xf32> to vector<8x2xf32>
    %14 = vector.extract_strided_slice %12 {offsets = [0, 0], sizes = [8, 254], strides = [1, 1]} : vector<8x256xf32> to vector<8x254xf32>
    %15 = tpu.concatenate %13, %14 in 1 : vector<8x2xf32>, vector<8x254xf32> -> vector<8x256xf32>
    %16 = vector.extract_strided_slice %12 {offsets = [0, 2], sizes = [8, 254], strides = [1, 1]} : vector<8x256xf32> to vector<8x254xf32>
    %17 = vector.extract_strided_slice %12 {offsets = [0, 0], sizes = [8, 2], strides = [1, 1]} : vector<8x256xf32> to vector<8x2xf32>
    %18 = tpu.concatenate %16, %17 in 1 : vector<8x254xf32>, vector<8x2xf32> -> vector<8x256xf32>
    %c2_i32 = arith.constant 2 : i32
    %19 = vector.broadcast %c2_i32 : i32 to vector<8x256xi32>
    %20 = arith.andi %1, %19 : vector<8x256xi32>
    %c0_i32_1 = arith.constant 0 : i32
    %21 = vector.broadcast %c0_i32_1 : i32 to vector<8x256xi32>
    %22 = arith.cmpi ne, %20, %21 : vector<8x256xi32>
    %23 = arith.select %22, %15, %18 : vector<8x256xi1>, vector<8x256xf32>
    %24 = vector.extract_strided_slice %23 {offsets = [0, 252], sizes = [8, 4], strides = [1, 1]} : vector<8x256xf32> to vector<8x4xf32>
    %25 = vector.extract_strided_slice %23 {offsets = [0, 0], sizes = [8, 252], strides = [1, 1]} : vector<8x256xf32> to vector<8x252xf32>
    %26 = tpu.concatenate %24, %25 in 1 : vector<8x4xf32>, vector<8x252xf32> -> vector<8x256xf32>
    %27 = vector.extract_strided_slice %23 {offsets = [0, 4], sizes = [8, 252], strides = [1, 1]} : vector<8x256xf32> to vector<8x252xf32>
    %28 = vector.extract_strided_slice %23 {offsets = [0, 0], sizes = [8, 4], strides = [1, 1]} : vector<8x256xf32> to vector<8x4xf32>
    %29 = tpu.concatenate %27, %28 in 1 : vector<8x252xf32>, vector<8x4xf32> -> vector<8x256xf32>
    %c4_i32 = arith.constant 4 : i32
    %30 = vector.broadcast %c4_i32 : i32 to vector<8x256xi32>
    %31 = arith.andi %1, %30 : vector<8x256xi32>
    %c0_i32_2 = arith.constant 0 : i32
    %32 = vector.broadcast %c0_i32_2 : i32 to vector<8x256xi32>
    %33 = arith.cmpi ne, %31, %32 : vector<8x256xi32>
    %34 = arith.select %33, %26, %29 : vector<8x256xi1>, vector<8x256xf32>
    %35 = vector.extract_strided_slice %34 {offsets = [0, 248], sizes = [8, 8], strides = [1, 1]} : vector<8x256xf32> to vector<8x8xf32>
    %36 = vector.extract_strided_slice %34 {offsets = [0, 0], sizes = [8, 248], strides = [1, 1]} : vector<8x256xf32> to vector<8x248xf32>
    %37 = tpu.concatenate %35, %36 in 1 : vector<8x8xf32>, vector<8x248xf32> -> vector<8x256xf32>
    %38 = vector.extract_strided_slice %34 {offsets = [0, 8], sizes = [8, 248], strides = [1, 1]} : vector<8x256xf32> to vector<8x248xf32>
    %39 = vector.extract_strided_slice %34 {offsets = [0, 0], sizes = [8, 8], strides = [1, 1]} : vector<8x256xf32> to vector<8x8xf32>
    %40 = tpu.concatenate %38, %39 in 1 : vector<8x248xf32>, vector<8x8xf32> -> vector<8x256xf32>
    %c8_i32 = arith.constant 8 : i32
    %41 = vector.broadcast %c8_i32 : i32 to vector<8x256xi32>
    %42 = arith.andi %1, %41 : vector<8x256xi32>
    %c0_i32_3 = arith.constant 0 : i32
    %43 = vector.broadcast %c0_i32_3 : i32 to vector<8x256xi32>
    %44 = arith.cmpi ne, %42, %43 : vector<8x256xi32>
    %45 = arith.select %44, %37, %40 : vector<8x256xi1>, vector<8x256xf32>
    %c0_4 = arith.constant 0 : index
    %c0_5 = arith.constant 0 : index
    %46 = vector.load %arg2[%c0_4, %c0_5] : memref<8x256xf32, #tpu.memory_space<vmem>>, vector<8x256xf32>
    tpu.vector_store %arg2[%c0_4, %c0_5], %45 {strides = array<i32>} : memref<8x256xf32, #tpu.memory_space<vmem>>, vector<8x256xf32>,
    return
  }
  func.func @transform_0(%arg0: i32) -> (i32, i32) {
    %c0_i32 = arith.constant 0 : i32
    %c0_i32_0 = arith.constant 0 : i32
    return %arg0, %c0_i32 : i32, i32
  }
  func.func @transform_1(%arg0: i32) -> (i32, i32) {
    %c0_i32 = arith.constant 0 : i32
    %c0_i32_0 = arith.constant 0 : i32
    return %arg0, %c0_i32 : i32, i32
  }
}

</mosaic_0001>

<llo_original>
// kernel: pallas_hflip.1
$region0: #{pallas_hflip.1}
  #allocation0 [shape = 'u32[]', space=smem, size = 0x4, offset = 0x4, fixed_abs, tag = 'smem constant byte address 0x4 - core index']
  #allocation1 [shape = 'u32[72,128]{1,0:T(1,128)}', space=vmem, size = 0x9000, scoped, tag = 'internal scratch']
  %s0 = inlined_call_operand.vmem [shape: f32[8,256], index: 0, kind: input, shape index: {}]
  %s1 = inlined_call_operand.vmem [shape: f32[8,256], index: 1, kind: output, shape index: {}]
  %s2 = sld [smem:[#allocation0]]
  $region14: #{pallas_hflip.1} parent=0
    _
  %s4 = ssub.s32 1, %s2
  %s5 = scalar_select 0, %s4, %s2
  // Predicated region
  $region2: #{pallas_hflip.1} parent=0 // pred_check
    _
  $region3: #{pallas_hflip.1} parent=0 // pred_check_branch
    %7 = sbr.rel (0) target = $region5
  $region4: #{pallas_hflip.1} parent=0 // pred_region
    _
  $region5: #{pallas_hflip.1} parent=0 // pred_fallthru
    _
  %v8 = vld [vmem:[%s0] sm:$0xff]
  %v9 = vld [vmem:[%s0 + $0x8] sm:$0xff]
  %v10 = vlaneseq
  %v11 = vand.u32 %v10, 127
  %v12 = vadd.s32 %v11, 128
  %14 = vrot.lane.b32.xlu0 %v9, 1
  %v15 = vpop.permute.xlu0 %14
  %18 = vrot.lane.b32.xlu0 %v8, 1
  %v19 = vpop.permute.xlu0 %18
  %vm20 = vcmask 7168
  %v21 = vsel %vm20, %v19, %v15
  %v24 = vsel %vm20, %v15, %v19
  %25 = vrot.lane.b32.xlu0 %v8, 127
  %v26 = vpop.permute.xlu0 %25
  %27 = vrot.lane.b32.xlu0 %v9, 127
  %v28 = vpop.permute.xlu0 %27
  %vm29 = vcmask 1039360
  %v30 = vsel %vm29, %v26, %v28
  %v34 = vsel %vm29, %v28, %v26
  %v35 = vand.u32 %v11, 1
  %v36 = vand.u32 %v12, 1
  %vm37 = vcmp.ne.s32.totalorder %v35, 0
  %vm38 = vcmp.ne.s32.totalorder %v36, 0
  %v39 = vsel %vm37, %v24, %v30
  %v40 = vsel %vm38, %v21, %v34
  %42 = vrot.lane.b32.xlu0 %v40, 2
  %v43 = vpop.permute.xlu0 %42
  %46 = vrot.lane.b32.xlu0 %v39, 2
  %v47 = vpop.permute.xlu0 %46
  %vm48 = vcmask 15360
  %v49 = vsel %vm48, %v47, %v43
  %v52 = vsel %vm48, %v43, %v47
  %53 = vrot.lane.b32.xlu0 %v39, 126
  %v54 = vpop.permute.xlu0 %53
  %55 = vrot.lane.b32.xlu0 %v40, 126
  %v56 = vpop.permute.xlu0 %55
  %vm57 = vcmask 1031168
  %v58 = vsel %vm57, %v54, %v56
  %v62 = vsel %vm57, %v56, %v54
  %v63 = vand.u32 %v11, 2
  %v64 = vand.u32 %v12, 2
  %vm65 = vcmp.ne.s32.totalorder %v63, 0
  %vm66 = vcmp.ne.s32.totalorder %v64, 0
  %v67 = vsel %vm65, %v52, %v58
  %v68 = vsel %vm66, %v49, %v62
  %70 = vrot.lane.b32.xlu0 %v68, 4
  %v71 = vpop.permute.xlu0 %70
  %74 = vrot.lane.b32.xlu0 %v67, 4
  %v75 = vpop.permute.xlu0 %74
  %vm76 = vcmask 31744
  %v77 = vsel %vm76, %v75, %v71
  %v80 = vsel %vm76, %v71, %v75
  %81 = vrot.lane.b32.xlu0 %v67, 124
  %v82 = vpop.permute.xlu0 %81
  %83 = vrot.lane.b32.xlu0 %v68, 124
  %v84 = vpop.permute.xlu0 %83
  %vm85 = vcmask 1014784
  %v86 = vsel %vm85, %v82, %v84
  %v90 = vsel %vm85, %v84, %v82
  %v91 = vand.u32 %v11, 4
  %v92 = vand.u32 %v12, 4
  %vm93 = vcmp.ne.s32.totalorder %v91, 0
  %vm94 = vcmp.ne.s32.totalorder %v92, 0
  %v95 = vsel %vm93, %v80, %v86
  %v96 = vsel %vm94, %v77, %v90
  %98 = vrot.lane.b32.xlu0 %v96, 8
  %v99 = vpop.permute.xlu0 %98
  %102 = vrot.lane.b32.xlu0 %v95, 8
  %v103 = vpop.permute.xlu0 %102
  %vm104 = vcmask 64512
  %v105 = vsel %vm104, %v103, %v99
  %v108 = vsel %vm104, %v99, %v103
  %109 = vrot.lane.b32.xlu0 %v95, 120
  %v110 = vpop.permute.xlu0 %109
  %111 = vrot.lane.b32.xlu0 %v96, 120
  %v112 = vpop.permute.xlu0 %111
  %vm113 = vcmask 982016
  %v114 = vsel %vm113, %v110, %v112
  %v118 = vsel %vm113, %v112, %v110
  %v119 = vand.u32 %v11, 8
  %v120 = vand.u32 %v12, 8
  %vm121 = vcmp.ne.s32.totalorder %v119, 0
  %vm122 = vcmp.ne.s32.totalorder %v120, 0
  %v123 = vsel %vm121, %v108, %v114
  %v124 = vsel %vm122, %v105, %v118
  %125 = vst [vmem:[%s1] sm:$0xff] %v123
  %126 = vst [vmem:[%s1 + $0x8] sm:$0xff] %v124
  // Predicated region
  $region6: #{pallas_hflip.1} parent=0 // pred_check
    _
  $region7: #{pallas_hflip.1} parent=0 // pred_check_branch
    %128 = sbr.rel (0) target = $region9
  $region8: #{pallas_hflip.1} parent=0 // pred_region
    _
  $region9: #{pallas_hflip.1} parent=0 // pred_fallthru
    _
  // Predicated region
  $region10: #{pallas_hflip.1} parent=0 // pred_check
    _
  $region11: #{pallas_hflip.1} parent=0 // pred_check_branch
    %130 = sbr.rel (0) target = $region13
  $region12: #{pallas_hflip.1} parent=0 // pred_region
    _
  $region13: #{pallas_hflip.1} parent=0 // pred_fallthru
    _

</llo_original>
